<compile_context>
chip_gen: v5e
topology: v5e:2x2
jax: 0.10.0
libtpu: 0.0.40
codegen_flags: <defaults>
</compile_context>

<pallas_src>
import math

import jax
import jax.numpy as jnp
from jax.experimental import pallas as pl
from jax.experimental.pallas import tpu as pltpu

HIDDEN = 64


def _round_up(x: int, m: int) -> int:
    return ((x + m - 1) // m) * m


def actor_kernel(
    x_ref, w1_ref, b1_ref, w2_ref, b2_ref, w3_ref, b3_ref, logstd_ref,
    mean_ref, logstd_out_ref, std_out_ref,
):
    # affine1 -> tanh (MXU matmul, f32 accumulate; tanh on EUP)
    h1 = jnp.tanh(
        jnp.dot(x_ref[...], w1_ref[...], preferred_element_type=jnp.float32)
        + b1_ref[...]
    )
    # affine2 -> tanh
    h2 = jnp.tanh(
        jnp.dot(h1, w2_ref[...], preferred_element_type=jnp.float32)
        + b2_ref[...]
    )
    # action_mean head (no activation). num_outputs is tiny but > 1 in general,
    # so keep it on the MXU (the N=1 VPU-reduce trick from the critic does not
    # apply directly here).
    mean = (
        jnp.dot(h2, w3_ref[...], preferred_element_type=jnp.float32)
        + b3_ref[...]
    )
    mean_ref[...] = mean.astype(mean_ref.dtype)

    # action_log_std: parameter (1, num_outputs) expanded over the batch tile;
    # action_std = exp(log_std) (EUP).
    log_std = logstd_ref[...]
    logstd_out_ref[...] = jnp.broadcast_to(
        log_std, logstd_out_ref.shape
    ).astype(logstd_out_ref.dtype)
    std_out_ref[...] = jnp.broadcast_to(
        jnp.exp(log_std), std_out_ref.shape
    ).astype(std_out_ref.dtype)


def actor_forward(x, params, *, block_b: int = 512):
    """x: (B, num_inputs) f32 -> (action_mean, action_log_std, action_std),
    each (B, num_outputs) f32."""
    w1, b1, w2, b2, w3, b3, log_std = params
    B, num_inputs = x.shape
    num_outputs = w3.shape[1]

    # Batch tile: multiple of 8 sublanes, capped so double-buffered x/out tiles
    # stay tiny relative to VMEM on all of v5e/v6e/v7x.
    tb = min(block_b, _round_up(B, 8))
    num_tiles = pl.cdiv(B, tb)
    b_pad = num_tiles * tb
    if b_pad != B:
        x = jnp.pad(x, ((0, b_pad - B), (0, 0)))

    # Batch-tiled operands/results.
    x_spec = pl.BlockSpec((tb, num_inputs), lambda i: (i, 0))
    out_spec = pl.BlockSpec((tb, num_outputs), lambda i: (i, 0))
    # Weights / biases / log_std: full blocks, resident in VMEM across steps.
    def resident(shape):
        return pl.BlockSpec(shape, lambda i: (0, 0))

    flops = 2 * b_pad * (num_inputs * HIDDEN + HIDDEN * HIDDEN
                         + HIDDEN * num_outputs)
    transcendentals = 2 * b_pad * HIDDEN + num_tiles * num_outputs
    bytes_accessed = 4 * (
        b_pad * num_inputs                      # x in
        + 3 * b_pad * num_outputs               # mean / log_std / std out
        + num_inputs * HIDDEN + HIDDEN * HIDDEN + HIDDEN * num_outputs
        + 2 * HIDDEN + 2 * num_outputs          # weights + biases + log_std
    )

    out_shapes = (
        jax.ShapeDtypeStruct((b_pad, num_outputs), jnp.float32),
        jax.ShapeDtypeStruct((b_pad, num_outputs), jnp.float32),
        jax.ShapeDtypeStruct((b_pad, num_outputs), jnp.float32),
    )

    mean, log_std_out, std_out = pl.pallas_call(
        actor_kernel,
        out_shape=out_shapes,
        grid=(num_tiles,),
        in_specs=[
            x_spec,
            resident(w1.shape), resident(b1.shape),
            resident(w2.shape), resident(b2.shape),
            resident(w3.shape), resident(b3.shape),
            resident(log_std.shape),
        ],
        out_specs=(out_spec, out_spec, out_spec),
        compiler_params=pltpu.CompilerParams(
            dimension_semantics=("parallel",)
        ),
        cost_estimate=pl.CostEstimate(
            flops=flops,
            transcendentals=transcendentals,
            bytes_accessed=bytes_accessed,
        ),
    )(x, w1, b1, w2, b2, w3, b3, log_std)

    if b_pad != B:
        mean = mean[:B]
        log_std_out = log_std_out[:B]
        std_out = std_out[:B]
    return mean, log_std_out, std_out


def init_actor_params(key, num_inputs, num_outputs):
    """Deterministic init mimicking PyTorch nn.Linear defaults:
    U(-1/sqrt(fan_in), 1/sqrt(fan_in)) for weights and biases, then
    action_mean.weight *= 0.1, action_mean.bias *= 0.0, action_log_std = 0."""
    k = jax.random.split(key, 6)

    def uniform(kk, shape, fan_in):
        bound = 1.0 / math.sqrt(fan_in)
        return jax.random.uniform(
            kk, shape, dtype=jnp.float32, minval=-bound, maxval=bound
        )

    # stored as (in_features, out_features); biases as (1, out) for 2D VMEM layout
    w1 = uniform(k[0], (num_inputs, HIDDEN), num_inputs)
    b1 = uniform(k[1], (1, HIDDEN), num_inputs)
    w2 = uniform(k[2], (HIDDEN, HIDDEN), HIDDEN)
    b2 = uniform(k[3], (1, HIDDEN), HIDDEN)
    w3 = uniform(k[4], (HIDDEN, num_outputs), HIDDEN) * 0.1
    b3 = uniform(k[5], (1, num_outputs), HIDDEN) * 0.0
    log_std = jnp.zeros((1, num_outputs), dtype=jnp.float32)
    return (w1, b1, w2, b2, w3, b3, log_std)


def actor_ref(x, params):
    """Pure-JAX reference for correctness check."""
    w1, b1, w2, b2, w3, b3, log_std = params
    h1 = jnp.tanh(x @ w1 + b1)
    h2 = jnp.tanh(h1 @ w2 + b2)
    mean = h2 @ w3 + b3
    log_std_b = jnp.broadcast_to(log_std, mean.shape)
    return mean, log_std_b, jnp.exp(log_std_b)


if __name__ == "__main__":
    key = jax.random.PRNGKey(0)
    k_params, k_x = jax.random.split(key)

    num_inputs = 16
    num_outputs = 4
    batch = 8

    params = init_actor_params(k_params, num_inputs, num_outputs)
    x = jax.random.normal(k_x, (batch, num_inputs), dtype=jnp.float32)

    mean, log_std_out, std_out = actor_forward(x, params)
    jax.block_until_ready((mean, log_std_out, std_out))

    mean_r, log_std_r, std_r = actor_ref(x, params)
    assert mean.shape == (batch, num_outputs), mean.shape
    assert log_std_out.shape == (batch, num_outputs), log_std_out.shape
    assert std_out.shape == (batch, num_outputs), std_out.shape
    assert jnp.allclose(mean, mean_r, atol=1e-5, rtol=1e-5)
    assert jnp.allclose(log_std_out, log_std_r, atol=1e-6, rtol=1e-6)
    assert jnp.allclose(std_out, std_r, atol=1e-6, rtol=1e-6)

    print("KERNEL_OK")
</pallas_src>

<mosaic_0001>
module attributes {stable_mosaic.version = 11 : i64} {
  func.func @actor_kernel(%arg0: i32, %arg1: memref<8x16xf32, #tpu.memory_space<vmem>>, %arg2: memref<16x64xf32, #tpu.memory_space<vmem>>, %arg3: memref<1x64xf32, #tpu.memory_space<vmem>>, %arg4: memref<64x64xf32, #tpu.memory_space<vmem>>, %arg5: memref<1x64xf32, #tpu.memory_space<vmem>>, %arg6: memref<64x4xf32, #tpu.memory_space<vmem>>, %arg7: memref<1x4xf32, #tpu.memory_space<vmem>>, %arg8: memref<1x4xf32, #tpu.memory_space<vmem>>, %arg9: memref<8x4xf32, #tpu.memory_space<vmem>>, %arg10: memref<8x4xf32, #tpu.memory_space<vmem>>, %arg11: memref<8x4xf32, #tpu.memory_space<vmem>>) attributes {dimension_semantics = [#tpu.dimension_semantics<parallel>], iteration_bounds = array<i64: 1>, scalar_prefetch = 0 : i64, scratch_operands = 0 : i64, tpu.core_type = #tpu.core_type<tc>, window_params = [{transform_indices = @transform_0, window_bounds = array<i64: 8, 16>}, {pipeline_mode = #tpu.pipeline_mode<synchronous>, transform_indices = @transform_1, window_bounds = array<i64: 16, 64>}, {pipeline_mode = #tpu.pipeline_mode<synchronous>, transform_indices = @transform_2, window_bounds = array<i64: 1, 64>}, {pipeline_mode = #tpu.pipeline_mode<synchronous>, transform_indices = @transform_3, window_bounds = array<i64: 64, 64>}, {pipeline_mode = #tpu.pipeline_mode<synchronous>, transform_indices = @transform_4, window_bounds = array<i64: 1, 64>}, {pipeline_mode = #tpu.pipeline_mode<synchronous>, transform_indices = @transform_5, window_bounds = array<i64: 64, 4>}, {pipeline_mode = #tpu.pipeline_mode<synchronous>, transform_indices = @transform_6, window_bounds = array<i64: 1, 4>}, {pipeline_mode = #tpu.pipeline_mode<synchronous>, transform_indices = @transform_7, window_bounds = array<i64: 1, 4>}, {transform_indices = @transform_8, window_bounds = array<i64: 8, 4>}, {transform_indices = @transform_9, window_bounds = array<i64: 8, 4>}, {transform_indices = @transform_10, window_bounds = array<i64: 8, 4>}]} {
    %c0 = arith.constant 0 : index
    %c0_0 = arith.constant 0 : index
    %0 = vector.load %arg1[%c0, %c0_0] : memref<8x16xf32, #tpu.memory_space<vmem>>, vector<8x16xf32>
    %c0_1 = arith.constant 0 : index
    %c0_2 = arith.constant 0 : index
    %1 = vector.load %arg2[%c0_1, %c0_2] : memref<16x64xf32, #tpu.memory_space<vmem>>, vector<16x64xf32>
    %cst = arith.constant dense<0.000000e+00> : vector<8x64xf32>
    %2 = tpu.matmul %0, %1, %cst {dimension_numbers = #tpu.dot_dimension_numbers<[1], [0], [0], [1], [0, 0, 1, 1], [], []>} : vector<8x16xf32>, vector<16x64xf32>, vector<8x64xf32> -> vector<8x64xf32>
    %c0_3 = arith.constant 0 : index
    %c0_4 = arith.constant 0 : index
    %3 = vector.load %arg3[%c0_3, %c0_4] : memref<1x64xf32, #tpu.memory_space<vmem>>, vector<1x64xf32>
    %4 = vector.broadcast %3 : vector<1x64xf32> to vector<8x64xf32>
    %5 = arith.addf %2, %4 : vector<8x64xf32>
    %6 = math.tanh %5 : vector<8x64xf32>
    %c0_5 = arith.constant 0 : index
    %c0_6 = arith.constant 0 : index
    %7 = vector.load %arg4[%c0_5, %c0_6] : memref<64x64xf32, #tpu.memory_space<vmem>>, vector<64x64xf32>
    %cst_7 = arith.constant dense<0.000000e+00> : vector<8x64xf32>
    %8 = tpu.matmul %6, %7, %cst_7 {dimension_numbers = #tpu.dot_dimension_numbers<[1], [0], [0], [1], [0, 0, 1, 1], [], []>} : vector<8x64xf32>, vector<64x64xf32>, vector<8x64xf32> -> vector<8x64xf32>
    %c0_8 = arith.constant 0 : index
    %c0_9 = arith.constant 0 : index
    %9 = vector.load %arg5[%c0_8, %c0_9] : memref<1x64xf32, #tpu.memory_space<vmem>>, vector<1x64xf32>
    %10 = vector.broadcast %9 : vector<1x64xf32> to vector<8x64xf32>
    %11 = arith.addf %8, %10 : vector<8x64xf32>
    %12 = math.tanh %11 : vector<8x64xf32>
    %c0_10 = arith.constant 0 : index
    %c0_11 = arith.constant 0 : index
    %13 = vector.load %arg6[%c0_10, %c0_11] : memref<64x4xf32, #tpu.memory_space<vmem>>, vector<64x4xf32>
    %cst_12 = arith.constant dense<0.000000e+00> : vector<8x4xf32>
    %14 = tpu.matmul %12, %13, %cst_12 {dimension_numbers = #tpu.dot_dimension_numbers<[1], [0], [0], [1], [0, 0, 1, 1], [], []>} : vector<8x64xf32>, vector<64x4xf32>, vector<8x4xf32> -> vector<8x4xf32>
    %c0_13 = arith.constant 0 : index
    %c0_14 = arith.constant 0 : index
    %15 = vector.load %arg7[%c0_13, %c0_14] : memref<1x4xf32, #tpu.memory_space<vmem>>, vector<1x4xf32>
    %16 = vector.broadcast %15 : vector<1x4xf32> to vector<8x4xf32>
    %17 = arith.addf %14, %16 : vector<8x4xf32>
    %c0_15 = arith.constant 0 : index
    %c0_16 = arith.constant 0 : index
    %18 = vector.load %arg9[%c0_15, %c0_16] : memref<8x4xf32, #tpu.memory_space<vmem>>, vector<8x4xf32>
    tpu.vector_store %arg9[%c0_15, %c0_16], %17 {strides = array<i32>} : memref<8x4xf32, #tpu.memory_space<vmem>>, vector<8x4xf32>,
    %c0_17 = arith.constant 0 : index
    %c0_18 = arith.constant 0 : index
    %19 = vector.load %arg8[%c0_17, %c0_18] : memref<1x4xf32, #tpu.memory_space<vmem>>, vector<1x4xf32>
    %20 = vector.shape_cast %19 : vector<1x4xf32> to vector<1x4xf32>
    %21 = vector.broadcast %20 : vector<1x4xf32> to vector<8x4xf32>
    %c0_19 = arith.constant 0 : index
    %c0_20 = arith.constant 0 : index
    %22 = vector.load %arg10[%c0_19, %c0_20] : memref<8x4xf32, #tpu.memory_space<vmem>>, vector<8x4xf32>
    tpu.vector_store %arg10[%c0_19, %c0_20], %21 {strides = array<i32>} : memref<8x4xf32, #tpu.memory_space<vmem>>, vector<8x4xf32>,
    %23 = math.exp %19 : vector<1x4xf32>
    %24 = vector.shape_cast %23 : vector<1x4xf32> to vector<1x4xf32>
    %25 = vector.broadcast %24 : vector<1x4xf32> to vector<8x4xf32>
    %c0_21 = arith.constant 0 : index
    %c0_22 = arith.constant 0 : index
    %26 = vector.load %arg11[%c0_21, %c0_22] : memref<8x4xf32, #tpu.memory_space<vmem>>, vector<8x4xf32>
    tpu.vector_store %arg11[%c0_21, %c0_22], %25 {strides = array<i32>} : memref<8x4xf32, #tpu.memory_space<vmem>>, vector<8x4xf32>,
    return
  }
  func.func @transform_0(%arg0: i32) -> (i32, i32) {
    %c0_i32 = arith.constant 0 : i32
    %c0_i32_0 = arith.constant 0 : i32
    return %arg0, %c0_i32 : i32, i32
  }
  func.func @transform_1(%arg0: i32) -> (i32, i32) {
    %c0_i32 = arith.constant 0 : i32
    %c0_i32_0 = arith.constant 0 : i32
    %c0_i32_1 = arith.constant 0 : i32
    return %c0_i32, %c0_i32_0 : i32, i32
  }
  func.func @transform_2(%arg0: i32) -> (i32, i32) {
    %c0_i32 = arith.constant 0 : i32
    %c0_i32_0 = arith.constant 0 : i32
    %c0_i32_1 = arith.constant 0 : i32
    return %c0_i32, %c0_i32_0 : i32, i32
  }
  func.func @transform_3(%arg0: i32) -> (i32, i32) {
    %c0_i32 = arith.constant 0 : i32
    %c0_i32_0 = arith.constant 0 : i32
    %c0_i32_1 = arith.constant 0 : i32
    return %c0_i32, %c0_i32_0 : i32, i32
  }
  func.func @transform_4(%arg0: i32) -> (i32, i32) {
    %c0_i32 = arith.constant 0 : i32
    %c0_i32_0 = arith.constant 0 : i32
    %c0_i32_1 = arith.constant 0 : i32
    return %c0_i32, %c0_i32_0 : i32, i32
  }
  func.func @transform_5(%arg0: i32) -> (i32, i32) {
    %c0_i32 = arith.constant 0 : i32
    %c0_i32_0 = arith.constant 0 : i32
    %c0_i32_1 = arith.constant 0 : i32
    return %c0_i32, %c0_i32_0 : i32, i32
  }
  func.func @transform_6(%arg0: i32) -> (i32, i32) {
    %c0_i32 = arith.constant 0 : i32
    %c0_i32_0 = arith.constant 0 : i32
    %c0_i32_1 = arith.constant 0 : i32
    return %c0_i32, %c0_i32_0 : i32, i32
  }
  func.func @transform_7(%arg0: i32) -> (i32, i32) {
    %c0_i32 = arith.constant 0 : i32
    %c0_i32_0 = arith.constant 0 : i32
    %c0_i32_1 = arith.constant 0 : i32
    return %c0_i32, %c0_i32_0 : i32, i32
  }
  func.func @transform_8(%arg0: i32) -> (i32, i32) {
    %c0_i32 = arith.constant 0 : i32
    %c0_i32_0 = arith.constant 0 : i32
    return %arg0, %c0_i32 : i32, i32
  }
  func.func @transform_9(%arg0: i32) -> (i32, i32) {
    %c0_i32 = arith.constant 0 : i32
    %c0_i32_0 = arith.constant 0 : i32
    return %arg0, %c0_i32 : i32, i32
  }
  func.func @transform_10(%arg0: i32) -> (i32, i32) {
    %c0_i32 = arith.constant 0 : i32
    %c0_i32_0 = arith.constant 0 : i32
    return %arg0, %c0_i32 : i32, i32
  }
}

</mosaic_0001>

<llo_original>
// kernel: tpu_custom_call.1
$region0: #{tpu_custom_call.1}
  #allocation0 [shape = 'u32[]', space=smem, size = 0x4, offset = 0x4, fixed_abs, tag = 'smem constant byte address 0x4 - core index']
  #allocation1 [shape = 'u32[72,128]{1,0:T(1,128)}', space=vmem, size = 0x9000, scoped, tag = 'internal scratch']
  %s0 = inlined_call_operand.hbm [shape: f32[8,16], index: 0, kind: input, shape index: {}]
  %s1 = inlined_call_operand.hbm [shape: f32[16,64], index: 1, kind: input, shape index: {}]
  %s2 = inlined_call_operand.vmem [shape: f32[1,64], index: 2, kind: input, shape index: {}]
  %s3 = inlined_call_operand.vmem [shape: f32[64,64], index: 3, kind: input, shape index: {}]
  %s4 = inlined_call_operand.vmem [shape: f32[1,64], index: 4, kind: input, shape index: {}]
  %s5 = inlined_call_operand.vmem [shape: f32[64,4], index: 5, kind: input, shape index: {}]
  %s6 = inlined_call_operand.vmem [shape: f32[1,4], index: 6, kind: input, shape index: {}]
  %s7 = inlined_call_operand.vmem [shape: f32[1,4], index: 7, kind: input, shape index: {}]
  %s8 = inlined_call_operand.vmem [shape: f32[8,4], index: 8, kind: output, shape index: {0}]
  %s9 = inlined_call_operand.vmem [shape: f32[8,4], index: 9, kind: output, shape index: {1}]
  %s10 = inlined_call_operand.vmem [shape: f32[8,4], index: 10, kind: output, shape index: {2}]
  %11 = xla_tuple %s8, %s9, %s10
  %s12 = sld [smem:[#allocation0]]
  $region66: #{tpu_custom_call.1} parent=0
    _
  %s14 = ssub.s32 1, %s12
  %s15 = scalar_select 0, %s14, %s12
  $region1: #{tpu_custom_call.1} parent=0
    #allocation2 [shape = 'u8[4096]{0}', space=vmem, size = 0x1000, scoped, tag = 'input window, operand 0, single buffered']
    #allocation3 [shape = 's32[1]{0}', space=sflag, size = 0x4, scoped, tag = 'scoped memory for tpu_custom_call.1']
    #allocation4 [shape = 'u8[8192]{0}', space=vmem, size = 0x2000, scoped, tag = 'input window, operand 1, single buffered']
    #allocation5 [shape = 's32[1]{0}', space=sflag, size = 0x4, scoped, tag = 'scoped memory for tpu_custom_call.1']
    %16 = vsyncpa [#allocation3], 0
    %17 = vsyncpa [#allocation5], 0
    // Predicated region
    $region2: #{tpu_custom_call.1} parent=1 // pred_check
      _
    $region3: #{tpu_custom_call.1} parent=1 // pred_check_branch
      %19 = sbr.rel (0) target = $region5
    $region4: #{tpu_custom_call.1} parent=1 // pred_region
      %21 = vsyncadd [#allocation3], 0
      %s23 = sshll.u32 %s0, 4
      %s24 = int_to_ptr.hbm [resolvable:$true] %s23
      %s25 = sshll.u32 [#allocation2], 4
      %s26 = int_to_ptr.vmem [resolvable:$true] %s25
      %28 = dma.hbm_to_vmem [thread:$0]  %s24, 128, %s26, [#allocation3]
    $region5: #{tpu_custom_call.1} parent=1 // pred_fallthru
      _
    // Predicated region
    $region6: #{tpu_custom_call.1} parent=1 // pred_check
      _
    $region7: #{tpu_custom_call.1} parent=1 // pred_check_branch
      %30 = sbr.rel (0) target = $region9
    $region8: #{tpu_custom_call.1} parent=1 // pred_region
      %32 = vsyncadd [#allocation5], 0
      %s33 = sshll.u32 %s1, 4
      %s34 = int_to_ptr.hbm [resolvable:$true] %s33
      %s35 = sshll.u32 [#allocation4], 4
      %s36 = int_to_ptr.vmem [resolvable:$true] %s35
      %41 = dma.hbm_to_vmem [thread:$0]  %s34, 256, %s36, [#allocation5], 128, 128, 8
    $region9: #{tpu_custom_call.1} parent=1 // pred_fallthru
      _
    // Predicated region
    $region10: #{tpu_custom_call.1} parent=1 // pred_check
      _
    $region11: #{tpu_custom_call.1} parent=1 // pred_check_branch
      %43 = sbr.rel (0) target = $region13
    $region12: #{tpu_custom_call.1} parent=1 // pred_region
      _
    $region13: #{tpu_custom_call.1} parent=1 // pred_fallthru
      _
    // Predicated region
    $region14: #{tpu_custom_call.1} parent=1 // pred_check
      _
    $region15: #{tpu_custom_call.1} parent=1 // pred_check_branch
      %45 = sbr.rel (0) target = $region17
    $region16: #{tpu_custom_call.1} parent=1 // pred_region
      _
    $region17: #{tpu_custom_call.1} parent=1 // pred_fallthru
      _
    // Predicated region
    $region18: #{tpu_custom_call.1} parent=1 // pred_check
      _
    $region19: #{tpu_custom_call.1} parent=1 // pred_check_branch
      %47 = sbr.rel (0) target = $region21
    $region20: #{tpu_custom_call.1} parent=1 // pred_region
      _
    $region21: #{tpu_custom_call.1} parent=1 // pred_fallthru
      _
    // Predicated region
    $region22: #{tpu_custom_call.1} parent=1 // pred_check
      _
    $region23: #{tpu_custom_call.1} parent=1 // pred_check_branch
      %49 = sbr.rel (0) target = $region25
    $region24: #{tpu_custom_call.1} parent=1 // pred_region
      _
    $region25: #{tpu_custom_call.1} parent=1 // pred_fallthru
      _
    // Predicated region
    $region26: #{tpu_custom_call.1} parent=1 // pred_check
      _
    $region27: #{tpu_custom_call.1} parent=1 // pred_check_branch
      %51 = sbr.rel (0) target = $region29
    $region28: #{tpu_custom_call.1} parent=1 // pred_region
      _
    $region29: #{tpu_custom_call.1} parent=1 // pred_fallthru
      _
    // Predicated region
    $region30: #{tpu_custom_call.1} parent=1 // pred_check
      _
    $region31: #{tpu_custom_call.1} parent=1 // pred_check_branch
      %53 = sbr.rel (0) target = $region33
    $region32: #{tpu_custom_call.1} parent=1 // pred_region
      _
    $region33: #{tpu_custom_call.1} parent=1 // pred_fallthru
      _
    // Predicated region
    $region34: #{tpu_custom_call.1} parent=1 // pred_check
      _
    $region35: #{tpu_custom_call.1} parent=1 // pred_check_branch
      %55 = sbr.rel (0) target = $region37
    $region36: #{tpu_custom_call.1} parent=1 // pred_region
      %57 = dma.done [#allocation3], 128
    $region37: #{tpu_custom_call.1} parent=1 // pred_fallthru
      _
    // Predicated region
    $region38: #{tpu_custom_call.1} parent=1 // pred_check
      _
    $region39: #{tpu_custom_call.1} parent=1 // pred_check_branch
      %59 = sbr.rel (0) target = $region41
    $region40: #{tpu_custom_call.1} parent=1 // pred_region
      %61 = dma.done [#allocation5], 256
    $region41: #{tpu_custom_call.1} parent=1 // pred_fallthru
      _
    %v62 = vld [vmem:[#allocation2] sm:$0xff]
    %v63 = vld [vmem:[#allocation4] sm:$0xff]
    %v64 = vld [vmem:[#allocation4 + $0x8] sm:$0xff]
    %v65 = vld [vmem:[%s2] sm:$0x1]
    %v67 = vperm.slane %v65, 0
    %vm69 = vcmask 130048
    %v71 = vsel %vm69, %v62, 0
    %73 = vmatpush.msra.mxu0 0.0
    %74 = vmatpush.msra.mxu0 0.0
    %75 = vmatpush.msra.mxu0 0.0
    %76 = vmatpush.msra.mxu0 0.0
    %77 = vmatpush.msra.mxu0 0.0
    %78 = vmatpush.msra.mxu0 0.0
    %79 = vmatpush.msra.mxu0 0.0
    %80 = vmatpush.msra.mxu0 0.0
    %81 = vmatpush.msra.mxu0 0.0
    %82 = vmatpush.msra.mxu0 0.0
    %83 = vmatpush.msra.mxu0 0.0
    %84 = vmatpush.msra.mxu0 0.0
    %85 = vmatpush.msra.mxu0 0.0
    %86 = vmatpush.msra.mxu0 0.0
    %87 = vmatpush.msra.mxu0 %v64
    %88 = vmatpush.msra.mxu0 %v63
    %89 = vmatmul.f32.gmra.mxu0 %v71
    %v90 = vpop.f32.mrf.mxu0
    %v91 = vadd.f32 %v67, %v90
    %92 = vdwg.mxu0
    %v93 = vtanh.pop %v91
    %v94 = vld [vmem:[%s3] sm:$0xff]
    %v95 = vld [vmem:[%s3 + $0x8] sm:$0xff]
    %v96 = vld [vmem:[%s3 + $0x10] sm:$0xff]
    %v97 = vld [vmem:[%s3 + $0x18] sm:$0xff]
    %v98 = vld [vmem:[%s3 + $0x20] sm:$0xff]
    %v99 = vld [vmem:[%s3 + $0x28] sm:$0xff]
    %v100 = vld [vmem:[%s3 + $0x30] sm:$0xff]
    %v101 = vld [vmem:[%s3 + $0x38] sm:$0xff]
    %v102 = vld [vmem:[%s4] sm:$0x1]
    %v104 = vperm.slane %v102, 0
    %vm106 = vcmask 523264
    %v108 = vsel %vm106, %v93, 0
    %110 = vmatpush.msra.mxu0 0.0
    %111 = vmatpush.msra.mxu0 0.0
    %112 = vmatpush.msra.mxu0 0.0
    %113 = vmatpush.msra.mxu0 0.0
    %114 = vmatpush.msra.mxu0 0.0
    %115 = vmatpush.msra.mxu0 0.0
    %116 = vmatpush.msra.mxu0 0.0
    %117 = vmatpush.msra.mxu0 0.0
    %118 = vmatpush.msra.mxu0 %v101
    %119 = vmatpush.msra.mxu0 %v100
    %120 = vmatpush.msra.mxu0 %v99
    %121 = vmatpush.msra.mxu0 %v98
    %122 = vmatpush.msra.mxu0 %v97
    %123 = vmatpush.msra.mxu0 %v96
    %124 = vmatpush.msra.mxu0 %v95
    %125 = vmatpush.msra.mxu0 %v94
    %126 = vmatmul.f32.gmra.mxu0 %v108
    %v127 = vpop.f32.mrf.mxu0
    %v128 = vadd.f32 %v104, %v127
    %129 = vdwg.mxu0
    %v130 = vtanh.pop %v128
    %v131 = vld [vmem:[%s5] sm:$0xff]
    %v132 = vld [vmem:[%s5 + $0x8] sm:$0xff]
    %v133 = vld [vmem:[%s5 + $0x10] sm:$0xff]
    %v134 = vld [vmem:[%s5 + $0x18] sm:$0xff]
    %v135 = vld [vmem:[%s5 + $0x20] sm:$0xff]
    %v136 = vld [vmem:[%s5 + $0x28] sm:$0xff]
    %v137 = vld [vmem:[%s5 + $0x30] sm:$0xff]
    %v138 = vld [vmem:[%s5 + $0x38] sm:$0xff]
    %v139 = vld [vmem:[%s6] sm:$0x1]
    %v141 = vperm.slane %v139, 0
    %v144 = vsel %vm106, %v130, 0
    %146 = vmatpush.msra.mxu0 0.0
    %147 = vmatpush.msra.mxu0 0.0
    %148 = vmatpush.msra.mxu0 0.0
    %149 = vmatpush.msra.mxu0 0.0
    %150 = vmatpush.msra.mxu0 0.0
    %151 = vmatpush.msra.mxu0 0.0
    %152 = vmatpush.msra.mxu0 0.0
    %153 = vmatpush.msra.mxu0 0.0
    %154 = vmatpush.msra.mxu0 %v138
    %155 = vmatpush.msra.mxu0 %v137
    %156 = vmatpush.msra.mxu0 %v136
    %157 = vmatpush.msra.mxu0 %v135
    %158 = vmatpush.msra.mxu0 %v134
    %159 = vmatpush.msra.mxu0 %v133
    %160 = vmatpush.msra.mxu0 %v132
    %161 = vmatpush.msra.mxu0 %v131
    %162 = vmatmul.f32.gmra.mxu0 %v144
    %v163 = vpop.f32.mrf.mxu0
    %v164 = vadd.f32 %v141, %v163
    %165 = vdwg.mxu0
    %vm166 = vcmask 31744
    %167 = vst.msk [vmem:[%s8] sm:$0xff] %vm166, %v164
    %v168 = vld [vmem:[%s7] sm:$0x1]
    %v170 = vperm.slane %v168, 0
    %172 = vst.msk [vmem:[%s9] sm:$0xff] %vm166, %v170
    %v173 = vmul.f32 %v168, 1.442695
    %v174 = vpow.pop %v173
    %v176 = vperm.slane %v174, 0
    %178 = vst.msk [vmem:[%s10] sm:$0xff] %vm166, %v176
    // Predicated region
    $region42: #{tpu_custom_call.1} parent=1 // pred_check
      _
    $region43: #{tpu_custom_call.1} parent=1 // pred_check_branch
      %180 = sbr.rel (0) target = $region45
    $region44: #{tpu_custom_call.1} parent=1 // pred_region
      _
    $region45: #{tpu_custom_call.1} parent=1 // pred_fallthru
      _
    // Predicated region
    $region46: #{tpu_custom_call.1} parent=1 // pred_check
      _
    $region47: #{tpu_custom_call.1} parent=1 // pred_check_branch
      %182 = sbr.rel (0) target = $region49
    $region48: #{tpu_custom_call.1} parent=1 // pred_region
      _
    $region49: #{tpu_custom_call.1} parent=1 // pred_fallthru
      _
    // Predicated region
    $region50: #{tpu_custom_call.1} parent=1 // pred_check
      _
    $region51: #{tpu_custom_call.1} parent=1 // pred_check_branch
      %184 = sbr.rel (0) target = $region53
    $region52: #{tpu_custom_call.1} parent=1 // pred_region
      _
    $region53: #{tpu_custom_call.1} parent=1 // pred_fallthru
      _
    // Predicated region
    $region54: #{tpu_custom_call.1} parent=1 // pred_check
      _
    $region55: #{tpu_custom_call.1} parent=1 // pred_check_branch
      %186 = sbr.rel (0) target = $region57
    $region56: #{tpu_custom_call.1} parent=1 // pred_region
      _
    $region57: #{tpu_custom_call.1} parent=1 // pred_fallthru
      _
    // Predicated region
    $region58: #{tpu_custom_call.1} parent=1 // pred_check
      _
    $region59: #{tpu_custom_call.1} parent=1 // pred_check_branch
      %188 = sbr.rel (0) target = $region61
    $region60: #{tpu_custom_call.1} parent=1 // pred_region
      _
    $region61: #{tpu_custom_call.1} parent=1 // pred_fallthru
      _
    // Predicated region
    $region62: #{tpu_custom_call.1} parent=1 // pred_check
      _
    $region63: #{tpu_custom_call.1} parent=1 // pred_check_branch
      %190 = sbr.rel (0) target = $region65
    $region64: #{tpu_custom_call.1} parent=1 // pred_region
      _
    $region65: #{tpu_custom_call.1} parent=1 // pred_fallthru
      _
    %191 = vsyncpa [#allocation3], 1
    %192 = vsyncpa [#allocation5], 1

</llo_original>
